<compile_context>
chip_gen: v5e
topology: v5e:2x2
jax: 0.10.0
libtpu: 0.0.40
codegen_flags: <defaults>
</compile_context>

<pallas_src>
from types import SimpleNamespace

import jax
import jax.numpy as jnp
from jax.experimental import pallas as pl
from jax.experimental.pallas import tpu as pltpu


_BIG_BIAS = 1.0e8  # additive mask bias on the squared-norm operand entry


# ----------------------------------------------------------------------------- #
# Pallas kernel: per-batch masked (squared-L2) Chamfer distance, M-axis tiled
# ----------------------------------------------------------------------------- #
def _chamfer_kernel(lhs_ref, rhs_ref, out_valid_ref, tgt_valid_ref,
                    l2_ref, minout_ref, tsum_ref, tcnt_ref):
    # lhs_ref       : (1, N, Da)   [-2*a, ||a||^2 + BIG*pad_a, 1]
    # rhs_ref       : (1, Da, TM)  [  b ;  1 ; ||b||^2 + BIG*pad_b]
    # out_valid_ref : (1, 1, N)    f32, 1.0 = valid output point (lane-dense)
    # tgt_valid_ref : (1, 1, TM)   f32, 1.0 = valid target point (lane-dense)
    # l2_ref        : (1, 1, 1)    per-batch chamfer loss (written on last tile)
    # minout_ref    : (N, 128)     lane-dense running min for out->tgt direction
    # tsum_ref/tcnt_ref : (1, 1)   tgt->out masked sum / valid-target count
    m = pl.program_id(1)
    nm = pl.num_programs(1)

    @pl.when(m == 0)
    def _init():
        minout_ref[...] = jnp.full_like(minout_ref, jnp.inf)
        tsum_ref[...] = jnp.zeros_like(tsum_ref)
        tcnt_ref[...] = jnp.zeros_like(tcnt_ref)

    a = lhs_ref[0]              # (N, Da)  native dtype
    bT = rhs_ref[0]             # (Da, TM)
    tvalid = tgt_valid_ref[0]   # (1, TM) f32

    # Single MXU pass emits the full biased squared-distance tile, f32 accumulate.
    dn = (((1,), (0,)), ((), ()))
    d = jax.lax.dot_general(a, bT, dn, preferred_element_type=jnp.float32)  # (N, TM)

    # out -> tgt: lane-dense running min, elementwise over static 128-lane groups
    # (pure VPU work, unmasked full-vreg loads/stores on the scratch).
    tm_lanes = d.shape[1]
    cur = minout_ref[...]                                       # (N, 128)
    for c in range(tm_lanes // 128):
        cur = jnp.minimum(cur, d[:, c * 128:(c + 1) * 128])
    minout_ref[...] = cur

    # tgt -> out: complete within this target tile (cheap cross-sublane reduce).
    min_tgt = jnp.min(d, axis=0, keepdims=True)                 # (1, TM)
    tsum_ref[...] += jnp.sum(min_tgt * tvalid, axis=1, keepdims=True)
    tcnt_ref[...] += jnp.sum(tvalid, axis=1, keepdims=True)

    @pl.when(m == nm - 1)
    def _finalize():
        ovalid = out_valid_ref[0]                               # (1, N) f32
        # Single cross-lane (XLU) reduce per batch, only here.
        min_out = jnp.min(minout_ref[...], axis=1, keepdims=True)   # (N, 1)
        # Masked sum over valid outputs via a tiny (1,N)x(N,1) contraction.
        sum_out = jax.lax.dot_general(ovalid, min_out, (((1,), (0,)), ((), ())),
                                      preferred_element_type=jnp.float32)   # (1, 1)
        cnt_out = jnp.sum(ovalid, axis=1, keepdims=True)                     # (1, 1)
        l2_ref[0] = sum_out / cnt_out + tsum_ref[...] / tcnt_ref[...]


# ----------------------------------------------------------------------------- #
# Host-side tiling / VMEM planning
# ----------------------------------------------------------------------------- #
def _round_up(x, m):
    return (x + m - 1) // m * m


def _vmem_capacity_bytes():
    try:
        info = pltpu.get_tpu_info()
        cap = getattr(info, "vmem_capacity_bytes", None)
        if cap:
            return int(cap)
    except Exception:
        pass
    return 64 * 1024 * 1024  # conservative (v7x-level) fallback


def _plan_tiles(N, M, da, itemsize, tile_m=None):
    """Pick the target-axis tile TM (multiple of 128) from an explicit per-
    generation VMEM byte accounting. Returns (tm, m_padded, vmem_limit_bytes)."""
    cap = _vmem_capacity_bytes()
    m_pad = _round_up(max(M, 128), 128)

    # Footprint model (per grid step, worst case):
    #   out_aug block (N,Da) lanes pad to 128, double-buffered
    #   out_valid row (1,N) sublanes pad to 8, double-buffered
    #   (N,128) running-min scratch + tiny accumulators (slack term)
    #   tgt block (Da,TM) sublanes pad to 8, double-buffered
    #   tgt_valid row (1,TM), double-buffered
    #   ~3 live (N,TM) f32 temporaries (matmul result + min intermediates)
    fixed = (2 * N * 128 * itemsize
             + 2 * 8 * N * 4
             + N * 128 * 4
             + (1 << 20))
    per_tm = 3 * N * 4 + 2 * max(8, da) * itemsize + 2 * 8 * 4

    # Working budget: a fraction of physical VMEM so double-buffering has headroom.
    budget = min(max(cap // 3, 16 << 20), 48 << 20)

    if tile_m is not None:
        tm = _round_up(min(int(tile_m), m_pad), 128)
    else:
        tm = (max(budget - fixed, 0) // per_tm // 128) * 128
        tm = int(max(128, min(tm, m_pad)))
        # TODO(synk): for very large N (>~16K on v7x) the N axis should also be
        # tiled; here we only floor TM at 128 and rely on vmem_limit_bytes.
    if tm >= m_pad:
        tm = m_pad
    else:
        m_pad = _round_up(m_pad, tm)

    footprint = fixed + per_tm * tm
    vmem_limit = int(min(cap - (4 << 20), max(2 * footprint, 16 << 20)))
    return tm, m_pad, vmem_limit


# ----------------------------------------------------------------------------- #
# Host wrapper
# ----------------------------------------------------------------------------- #
def chamfer_loss_pallas(output_set, output_mask, target_set, target_mask, *,
                        tile_m=None, mxu_dtype=None):
    """Masked bidirectional squared-L2 Chamfer loss, averaged over the batch.

    Masks: bool [B, N] / [B, M], True = padded slot (ignored), False = real point.
    Precondition (same as the reference): every batch row has >=1 valid point on
    each side, otherwise the per-batch mean is NaN.

    mxu_dtype: optionally force the MXU operand dtype (e.g. jnp.bfloat16 on v7x,
    where the MXU has no native f32 path). Default keeps the input dtype.
    """
    B, N, D = output_set.shape
    _, M, _ = target_set.shape
    cdtype = mxu_dtype if mxu_dtype is not None else output_set.dtype
    itemsize = jnp.dtype(cdtype).itemsize
    Da = D + 2

    tm_size, m_pad, vmem_limit = _plan_tiles(N, M, Da, itemsize, tile_m)

    if m_pad != M:
        pad = m_pad - M
        target_set = jnp.pad(target_set, ((0, 0), (0, pad), (0, 0)))
        target_mask = jnp.pad(target_mask, ((0, 0), (0, pad)), constant_values=True)
        M = m_pad

    # Fold -2 scale, squared norms and the additive mask bias into MXU operands.
    a32 = output_set.astype(jnp.float32)
    b32 = target_set.astype(jnp.float32)
    a_sq = jnp.sum(a32 * a32, axis=-1, keepdims=True)                  # (B, N, 1)
    b_sq = jnp.sum(b32 * b32, axis=-1, keepdims=True)                  # (B, M, 1)
    a_bias = jnp.where(output_mask, _BIG_BIAS, 0.0)[..., None]         # (B, N, 1)
    b_bias = jnp.where(target_mask, _BIG_BIAS, 0.0)[..., None]         # (B, M, 1)
    ones_a = jnp.ones((B, N, 1), jnp.float32)
    ones_b = jnp.ones((B, M, 1), jnp.float32)

    lhs = jnp.concatenate([-2.0 * a32, a_sq + a_bias, ones_a],
                          axis=-1).astype(cdtype)                      # (B, N, Da)
    rhs = jnp.concatenate([b32, ones_b, b_sq + b_bias],
                          axis=-1).astype(cdtype)                      # (B, M, Da)
    rhs_t = jnp.transpose(rhs, (0, 2, 1))                              # (B, Da, M)

    # Lane-dense validity rows (1.0 = valid).
    out_valid = (~output_mask).astype(jnp.float32)[:, None, :]         # (B, 1, N)
    tgt_valid = (~target_mask).astype(jnp.float32)[:, None, :]         # (B, 1, M)

    grid = (B, M // tm_size)

    grid_spec = pltpu.PrefetchScalarGridSpec(
        num_scalar_prefetch=0,
        grid=grid,
        in_specs=[
            pl.BlockSpec((1, N, Da), lambda b, m: (b, 0, 0)),
            pl.BlockSpec((1, Da, tm_size), lambda b, m: (b, 0, m)),
            pl.BlockSpec((1, 1, N), lambda b, m: (b, 0, 0)),
            pl.BlockSpec((1, 1, tm_size), lambda b, m: (b, 0, m)),
        ],
        out_specs=pl.BlockSpec((1, 1, 1), lambda b, m: (b, 0, 0)),
        scratch_shapes=[
            pltpu.VMEM((N, 128), jnp.float32),   # lane-dense running min (out->tgt)
            pltpu.VMEM((1, 1), jnp.float32),     # accumulated tgt->out masked sum
            pltpu.VMEM((1, 1), jnp.float32),     # accumulated valid-target count
        ],
    )

    per_batch = pl.pallas_call(
        _chamfer_kernel,
        out_shape=jax.ShapeDtypeStruct((B, 1, 1), jnp.float32),
        grid_spec=grid_spec,
        compiler_params=pltpu.CompilerParams(
            dimension_semantics=("parallel", "arbitrary"),
            vmem_limit_bytes=vmem_limit),
    )(lhs, rhs_t, out_valid, tgt_valid)

    return jnp.mean(per_batch)


# ----------------------------------------------------------------------------- #
# ChamferCriterion.forward equivalent
# ----------------------------------------------------------------------------- #
def chamfer_criterion_forward(output, target_set, target_mask, args, epoch=None,
                              check_cardinality=False):
    output_set, output_mask, kls = output['set'], output['set_mask'], output['kls']

    if check_cardinality:
        # Reference module's assert; forces a device->host sync, so it is off by
        # default in the training hot path.
        n_out = int(jnp.sum(~output_mask))
        n_tgt = int(jnp.sum(~target_mask))
        assert n_out == n_tgt, f'{n_out} != {n_tgt}'

    # TODO(synk): the CUDA 'accelerate' chamfer extension path has no TPU meaning;
    # the Pallas kernel is always used.
    l2_loss = chamfer_loss_pallas(output_set, output_mask, target_set, target_mask)

    kl_stack = jnp.stack(kls, axis=1)                 # (B, num_scales)
    kl_loss = jnp.mean(jnp.sum(kl_stack, axis=1))     # scalar

    if args.kl_warmup_epochs > 0:
        assert epoch is not None
        beta = args.beta * min(1, epoch / args.kl_warmup_epochs)
    else:
        beta = args.beta

    loss = beta * kl_loss + l2_loss

    # torch .detach() -> stop_gradient (no effect in this forward-only path).
    topdown_kl = [jnp.mean(jax.lax.stop_gradient(kl), axis=0) / float(scale * args.z_dim)
                  for scale, kl in zip(args.z_scales, kls)]

    return {'loss': loss, 'kl': kl_loss, 'l2': l2_loss,
            'topdown_kl': topdown_kl, 'beta': beta}


# ----------------------------------------------------------------------------- #
# Pure-JAX reference (for correctness checking only)
# ----------------------------------------------------------------------------- #
def _chamfer_ref(a, a_mask, b, b_mask):
    va = (~a_mask).astype(jnp.float32)
    vb = (~b_mask).astype(jnp.float32)
    d = jnp.sum((a[:, :, None, :] - b[:, None, :, :]) ** 2, axis=-1)   # (B, N, M)
    big = jnp.float32(1e30)
    min_a = jnp.min(d + (1.0 - vb)[:, None, :] * big, axis=2)          # (B, N)
    min_b = jnp.min(d + (1.0 - va)[:, :, None] * big, axis=1)          # (B, M)
    l2 = (jnp.sum(min_a * va, axis=1) / jnp.sum(va, axis=1)
          + jnp.sum(min_b * vb, axis=1) / jnp.sum(vb, axis=1))
    return jnp.mean(l2)


if __name__ == "__main__":
    B, N, D = 2, 16, 2
    num_scales = 3

    key = jax.random.PRNGKey(0)
    k_out, k_tgt, k_kl, k_big = jax.random.split(key, 4)

    output_set = jax.random.normal(k_out, (B, N, D), jnp.float32)
    target_set = jax.random.normal(k_tgt, (B, N, D), jnp.float32)

    # padding masks (True = padded); same per-batch cardinality for output & target
    n_valid = jnp.array([12, 16])
    idx = jnp.arange(N)
    output_mask = idx[None, :] >= n_valid[:, None]   # (B, N) bool
    target_mask = idx[None, :] >= n_valid[:, None]   # (B, N) bool

    kls = [jax.random.uniform(k, (B,), jnp.float32, minval=0.0, maxval=1.0)
           for k in jax.random.split(k_kl, num_scales)]

    args = SimpleNamespace(beta=0.5, kl_warmup_epochs=10,
                           z_scales=(2, 4, 8), z_dim=16, device='tpu')
    epoch = 5

    output = {'set': output_set, 'set_mask': output_mask, 'kls': kls}
    result = chamfer_criterion_forward(output, target_set, target_mask, args, epoch=epoch)
    jax.block_until_ready(result['loss'])

    # verify the Pallas chamfer against a pure-JAX reference
    l2_ref_val = _chamfer_ref(output_set, output_mask, target_set, target_mask)
    assert jnp.allclose(result['l2'], l2_ref_val, rtol=1e-4, atol=1e-5), \
        (result['l2'], l2_ref_val)

    # second check: multi-tile target axis (tile_m=128, M padded 200->256) with
    # arbitrary (non-suffix) masks and unequal N/M.
    N2, M2 = 256, 200
    ka, kb, kma, kmb = jax.random.split(k_big, 4)
    a2 = jax.random.normal(ka, (B, N2, D), jnp.float32)
    b2 = jax.random.normal(kb, (B, M2, D), jnp.float32)
    am2 = jax.random.uniform(kma, (B, N2)) < 0.25    # True = padded
    bm2 = jax.random.uniform(kmb, (B, M2)) < 0.25
    l2_tiled = chamfer_loss_pallas(a2, am2, b2, bm2, tile_m=128)
    jax.block_until_ready(l2_tiled)
    l2_tiled_ref = _chamfer_ref(a2, am2, b2, bm2)
    assert jnp.allclose(l2_tiled, l2_tiled_ref, rtol=1e-4, atol=1e-4), \
        (l2_tiled, l2_tiled_ref)

    print("KERNEL_OK")
</pallas_src>

<mosaic_0001>
module attributes {stable_mosaic.version = 11 : i64} {
  func.func @_chamfer_kernel(%arg0: i32, %arg1: i32, %arg2: memref<1x16x4xf32, #tpu.memory_space<vmem>>, %arg3: memref<1x4x128xf32, #tpu.memory_space<vmem>>, %arg4: memref<1x1x16xf32, #tpu.memory_space<vmem>>, %arg5: memref<1x1x128xf32, #tpu.memory_space<vmem>>, %arg6: memref<1x1x1xf32, #tpu.memory_space<vmem>>, %arg7: memref<16x128xf32, #tpu.memory_space<vmem>>, %arg8: memref<1x1xf32, #tpu.memory_space<vmem>>, %arg9: memref<1x1xf32, #tpu.memory_space<vmem>>) attributes {dimension_semantics = [#tpu.dimension_semantics<parallel>, #tpu.dimension_semantics<arbitrary>], iteration_bounds = array<i64: 2, 1>, scalar_prefetch = 0 : i64, scratch_operands = 3 : i64, tpu.core_type = #tpu.core_type<tc>, window_params = [{transform_indices = @transform_0, window_bounds = array<i64: 1, 16, 4>}, {transform_indices = @transform_1, window_bounds = array<i64: 1, 4, 128>}, {transform_indices = @transform_2, window_bounds = array<i64: 1, 1, 16>}, {transform_indices = @transform_3, window_bounds = array<i64: 1, 1, 128>}, {transform_indices = @transform_4, window_bounds = array<i64: 1, 1, 1>}]} {
    %c0_i32 = arith.constant 0 : i32
    %0 = arith.cmpi eq, %arg1, %c0_i32 : i32
    %1 = arith.extui %0 : i1 to i32
    %c0_i32_0 = arith.constant 0 : i32
    %2 = arith.cmpi ne, %1, %c0_i32_0 : i32
    scf.if %2 {
      %cst_26 = arith.constant 0x7F800000 : f32
      %29 = vector.broadcast %cst_26 : f32 to vector<16x128xf32>
      %c0_27 = arith.constant 0 : index
      %c0_28 = arith.constant 0 : index
      %30 = vector.load %arg7[%c0_27, %c0_28] : memref<16x128xf32, #tpu.memory_space<vmem>>, vector<16x128xf32>
      tpu.vector_store %arg7[%c0_27, %c0_28], %29 {strides = array<i32>} : memref<16x128xf32, #tpu.memory_space<vmem>>, vector<16x128xf32>,
      %cst_29 = arith.constant 0.000000e+00 : f32
      %31 = vector.broadcast %cst_29 : f32 to vector<1x1xf32>
      %c0_30 = arith.constant 0 : index
      %c0_31 = arith.constant 0 : index
      %32 = vector.load %arg8[%c0_30, %c0_31] : memref<1x1xf32, #tpu.memory_space<vmem>>, vector<1x1xf32>
      tpu.vector_store %arg8[%c0_30, %c0_31], %31 {strides = array<i32>} : memref<1x1xf32, #tpu.memory_space<vmem>>, vector<1x1xf32>,
      %cst_32 = arith.constant 0.000000e+00 : f32
      %33 = vector.broadcast %cst_32 : f32 to vector<1x1xf32>
      %c0_33 = arith.constant 0 : index
      %c0_34 = arith.constant 0 : index
      %34 = vector.load %arg9[%c0_33, %c0_34] : memref<1x1xf32, #tpu.memory_space<vmem>>, vector<1x1xf32>
      tpu.vector_store %arg9[%c0_33, %c0_34], %33 {strides = array<i32>} : memref<1x1xf32, #tpu.memory_space<vmem>>, vector<1x1xf32>,
    } else {
    }
    %c0 = arith.constant 0 : index
    %c0_1 = arith.constant 0 : index
    %c0_2 = arith.constant 0 : index
    %3 = vector.load %arg2[%c0, %c0_1, %c0_2] : memref<1x16x4xf32, #tpu.memory_space<vmem>>, vector<1x16x4xf32>
    %4 = vector.shape_cast %3 : vector<1x16x4xf32> to vector<16x4xf32>
    %c0_3 = arith.constant 0 : index
    %c0_4 = arith.constant 0 : index
    %c0_5 = arith.constant 0 : index
    %5 = vector.load %arg3[%c0_3, %c0_4, %c0_5] : memref<1x4x128xf32, #tpu.memory_space<vmem>>, vector<1x4x128xf32>
    %6 = vector.shape_cast %5 : vector<1x4x128xf32> to vector<4x128xf32>
    %c0_6 = arith.constant 0 : index
    %c0_7 = arith.constant 0 : index
    %c0_8 = arith.constant 0 : index
    %7 = vector.load %arg5[%c0_6, %c0_7, %c0_8] : memref<1x1x128xf32, #tpu.memory_space<vmem>>, vector<1x1x128xf32>
    %8 = vector.shape_cast %7 : vector<1x1x128xf32> to vector<1x128xf32>
    %cst = arith.constant dense<0.000000e+00> : vector<16x128xf32>
    %9 = tpu.matmul %4, %6, %cst {dimension_numbers = #tpu.dot_dimension_numbers<[1], [0], [0], [1], [0, 0, 1, 1], [], []>} : vector<16x4xf32>, vector<4x128xf32>, vector<16x128xf32> -> vector<16x128xf32>
    %c0_9 = arith.constant 0 : index
    %c0_10 = arith.constant 0 : index
    %10 = vector.load %arg7[%c0_9, %c0_10] : memref<16x128xf32, #tpu.memory_space<vmem>>, vector<16x128xf32>
    %11 = arith.minimumf %10, %9 : vector<16x128xf32>
    %c0_11 = arith.constant 0 : index
    %c0_12 = arith.constant 0 : index
    %12 = vector.load %arg7[%c0_11, %c0_12] : memref<16x128xf32, #tpu.memory_space<vmem>>, vector<16x128xf32>
    tpu.vector_store %arg7[%c0_11, %c0_12], %11 {strides = array<i32>} : memref<16x128xf32, #tpu.memory_space<vmem>>, vector<16x128xf32>,
    %cst_13 = arith.constant dense<0x7F800000> : vector<128xf32>
    %13 = vector.multi_reduction <minimumf>, %9, %cst_13 [0] : vector<16x128xf32> to vector<128xf32>
    %14 = vector.shape_cast %13 : vector<128xf32> to vector<1x128xf32>
    %c0_14 = arith.constant 0 : index
    %c0_15 = arith.constant 0 : index
    %15 = vector.load %arg8[%c0_14, %c0_15] : memref<1x1xf32, #tpu.memory_space<vmem>>, vector<1x1xf32>
    %16 = arith.mulf %14, %8 : vector<1x128xf32>
    %cst_16 = arith.constant dense<0.000000e+00> : vector<1xf32>
    %17 = vector.multi_reduction <add>, %16, %cst_16 [1] : vector<1x128xf32> to vector<1xf32>
    %18 = vector.shape_cast %17 : vector<1xf32> to vector<1x1xf32>
    %19 = arith.addf %15, %18 : vector<1x1xf32>
    %c0_17 = arith.constant 0 : index
    %c0_18 = arith.constant 0 : index
    %20 = vector.load %arg8[%c0_17, %c0_18] : memref<1x1xf32, #tpu.memory_space<vmem>>, vector<1x1xf32>
    tpu.vector_store %arg8[%c0_17, %c0_18], %19 {strides = array<i32>} : memref<1x1xf32, #tpu.memory_space<vmem>>, vector<1x1xf32>,
    %c0_19 = arith.constant 0 : index
    %c0_20 = arith.constant 0 : index
    %21 = vector.load %arg9[%c0_19, %c0_20] : memref<1x1xf32, #tpu.memory_space<vmem>>, vector<1x1xf32>
    %cst_21 = arith.constant dense<0.000000e+00> : vector<1xf32>
    %22 = vector.multi_reduction <add>, %8, %cst_21 [1] : vector<1x128xf32> to vector<1xf32>
    %23 = vector.shape_cast %22 : vector<1xf32> to vector<1x1xf32>
    %24 = arith.addf %21, %23 : vector<1x1xf32>
    %c0_22 = arith.constant 0 : index
    %c0_23 = arith.constant 0 : index
    %25 = vector.load %arg9[%c0_22, %c0_23] : memref<1x1xf32, #tpu.memory_space<vmem>>, vector<1x1xf32>
    tpu.vector_store %arg9[%c0_22, %c0_23], %24 {strides = array<i32>} : memref<1x1xf32, #tpu.memory_space<vmem>>, vector<1x1xf32>,
    %c0_i32_24 = arith.constant 0 : i32
    %26 = arith.cmpi eq, %arg1, %c0_i32_24 : i32
    %27 = arith.extui %26 : i1 to i32
    %c0_i32_25 = arith.constant 0 : i32
    %28 = arith.cmpi ne, %27, %c0_i32_25 : i32
    scf.if %28 {
      %c0_26 = arith.constant 0 : index
      %c0_27 = arith.constant 0 : index
      %c0_28 = arith.constant 0 : index
      %29 = vector.load %arg4[%c0_26, %c0_27, %c0_28] : memref<1x1x16xf32, #tpu.memory_space<vmem>>, vector<1x1x16xf32>
      %30 = vector.shape_cast %29 : vector<1x1x16xf32> to vector<1x16xf32>
      %c0_29 = arith.constant 0 : index
      %c0_30 = arith.constant 0 : index
      %31 = vector.load %arg7[%c0_29, %c0_30] : memref<16x128xf32, #tpu.memory_space<vmem>>, vector<16x128xf32>
      %cst_31 = arith.constant dense<0x7F800000> : vector<16xf32>
      %32 = vector.multi_reduction <minimumf>, %31, %cst_31 [1] : vector<16x128xf32> to vector<16xf32>
      %33 = vector.shape_cast %32 : vector<16xf32> to vector<16x1xf32>
      %cst_32 = arith.constant dense<0.000000e+00> : vector<1x1xf32>
      %34 = tpu.matmul %30, %33, %cst_32 {dimension_numbers = #tpu.dot_dimension_numbers<[1], [0], [0], [1], [0, 0, 1, 1], [], []>} : vector<1x16xf32>, vector<16x1xf32>, vector<1x1xf32> -> vector<1x1xf32>
      %cst_33 = arith.constant dense<0.000000e+00> : vector<1xf32>
      %35 = vector.multi_reduction <add>, %30, %cst_33 [1] : vector<1x16xf32> to vector<1xf32>
      %36 = vector.shape_cast %35 : vector<1xf32> to vector<1x1xf32>
      %37 = arith.divf %34, %36 : vector<1x1xf32>
      %c0_34 = arith.constant 0 : index
      %c0_35 = arith.constant 0 : index
      %38 = vector.load %arg8[%c0_34, %c0_35] : memref<1x1xf32, #tpu.memory_space<vmem>>, vector<1x1xf32>
      %c0_36 = arith.constant 0 : index
      %c0_37 = arith.constant 0 : index
      %39 = vector.load %arg9[%c0_36, %c0_37] : memref<1x1xf32, #tpu.memory_space<vmem>>, vector<1x1xf32>
      %40 = arith.divf %38, %39 : vector<1x1xf32>
      %41 = arith.addf %37, %40 : vector<1x1xf32>
      %c0_38 = arith.constant 0 : index
      %c0_39 = arith.constant 0 : index
      %c0_40 = arith.constant 0 : index
      %42 = vector.load %arg6[%c0_38, %c0_39, %c0_40] : memref<1x1x1xf32, #tpu.memory_space<vmem>>, vector<1x1x1xf32>
      %43 = vector.shape_cast %42 : vector<1x1x1xf32> to vector<1x1xf32>
      %44 = vector.shape_cast %41 : vector<1x1xf32> to vector<1x1x1xf32>
      tpu.vector_store %arg6[%c0_38, %c0_39, %c0_40], %44 {strides = array<i32>} : memref<1x1x1xf32, #tpu.memory_space<vmem>>, vector<1x1x1xf32>,
    } else {
    }
    return
  }
  func.func @transform_0(%arg0: i32, %arg1: i32) -> (i32, i32, i32) {
    %c0_i32 = arith.constant 0 : i32
    %c0_i32_0 = arith.constant 0 : i32
    %c0_i32_1 = arith.constant 0 : i32
    return %arg0, %c0_i32, %c0_i32_0 : i32, i32, i32
  }
  func.func @transform_1(%arg0: i32, %arg1: i32) -> (i32, i32, i32) {
    %c0_i32 = arith.constant 0 : i32
    %c0_i32_0 = arith.constant 0 : i32
    return %arg0, %c0_i32, %arg1 : i32, i32, i32
  }
  func.func @transform_2(%arg0: i32, %arg1: i32) -> (i32, i32, i32) {
    %c0_i32 = arith.constant 0 : i32
    %c0_i32_0 = arith.constant 0 : i32
    %c0_i32_1 = arith.constant 0 : i32
    return %arg0, %c0_i32, %c0_i32_0 : i32, i32, i32
  }
  func.func @transform_3(%arg0: i32, %arg1: i32) -> (i32, i32, i32) {
    %c0_i32 = arith.constant 0 : i32
    %c0_i32_0 = arith.constant 0 : i32
    return %arg0, %c0_i32, %arg1 : i32, i32, i32
  }
  func.func @transform_4(%arg0: i32, %arg1: i32) -> (i32, i32, i32) {
    %c0_i32 = arith.constant 0 : i32
    %c0_i32_0 = arith.constant 0 : i32
    %c0_i32_1 = arith.constant 0 : i32
    return %arg0, %c0_i32, %c0_i32_0 : i32, i32, i32
  }
}

</mosaic_0001>

<llo_original>
// kernel: tpu_custom_call.1
$region0: #{tpu_custom_call.1}
  #allocation0 [shape = 'u32[]', space=smem, size = 0x4, offset = 0x4, fixed_abs, tag = 'smem constant byte address 0x4 - core index']
  #allocation1 [shape = 'u32[72,128]{1,0:T(1,128)}', space=vmem, size = 0x9000, scoped, tag = 'internal scratch']
  #allocation2 [shape = 'f32[16,128]{1,0:T(8,128)}', space=vmem, size = 0x2000, scoped, tag = 'scratch operand']
  #allocation3 [shape = 'f32[1,1]{1,0:T(1,128)}', space=vmem, size = 0x200, scoped, tag = 'scratch operand']
  #allocation4 [shape = 'f32[1,1]{1,0:T(1,128)}', space=vmem, size = 0x200, scoped, tag = 'scratch operand']
  %s0 = inlined_call_operand.vmem [shape: f32[2,16,4], index: 0, kind: input, shape index: {}]
  %s1 = inlined_call_operand.vmem [shape: f32[2,4,128], index: 1, kind: input, shape index: {}]
  %s2 = inlined_call_operand.vmem [shape: f32[2,1,16], index: 2, kind: input, shape index: {}]
  %s3 = inlined_call_operand.vmem [shape: f32[2,1,128], index: 3, kind: input, shape index: {}]
  %s4 = inlined_call_operand.vmem [shape: f32[2,1,1], index: 4, kind: output, shape index: {}]
  %s5 = sld [smem:[#allocation0]]
  $region57: #{tpu_custom_call.1} parent=0
    _
  %s7 = ssub.s32 1, %s5
  %s8 = scalar_select 0, %s7, %s5
  loop: start=0, step=1, limit=4
  $region2: #{tpu_custom_call.1} parent=0 // loop_pre_header
    _
  $region3: #{tpu_custom_call.1} parent=0 // loop_header
    %s10 = sphi 0, %s14
    %p11 = scmp.ge.s32.totalorder %s10, 4
    %s17 = sphi 0, %s29
    %s18 = sphi 0, %s25
    %s19 = sphi 0, %s17
    %s20 = sphi 0, %s18
    %s21 = sphi 0, %s19
    %s22 = sphi 0, %s20
    %s32 = sphi 0, %s34
    %s35 = sphi 0, %s32
    %s36 = sphi 0, %s35
    %s52 = sphi 0, %s36
    %s60 = sphi 0, %s62
    %s63 = sphi 0, %s60
    %s64 = sphi 0, %s63
    %s80 = sphi 0, %s64
    %s86 = sphi 0, %s88
    %s89 = sphi 0, %s86
    %s90 = sphi 0, %s89
    %s106 = sphi 0, %s90
    %s114 = sphi 0, %s116
    %s117 = sphi 0, %s114
    %s118 = sphi 0, %s117
    %s134 = sphi 0, %s118
    %s140 = sphi 0, %s142
    %s143 = sphi 0, %s140
    %s144 = sphi 0, %s143
    %s160 = sphi 0, %s144
  $region4: #{tpu_custom_call.1} parent=0 // loop_header_branch
    %13 = sbr.rel (%p11) target = $region8
  $region5: #{tpu_custom_call.1} parent=0 // loop_body
    %s15 = ssub.s32 %s10, 1
    %s16 = ssub.s32 %s10, 2
    %s23 = sadd.s32 1, %s18
    %p24 = scmp.ge.s32.totalorder %s23, 1
    %s25 = scalar_select %p24, 0, %s23
    %s26 = sadd.s32 1, %s17
    %s27 = scalar_select %p24, %s26, %s17
    %p28 = scmp.ge.s32.totalorder %s27, 2
    %s29 = scalar_select %p28, 0, %s27
    %s30 = ssub.s32 %s17, %s29
    %p31 = scmp.eq.s32.totalorder %s30, 0
    %s33 = sadd.s32 %s32, 1
    %s34 = scalar_select %p31, %s32, %s33
    %p37 = pneg %p31
    %p38 = scmp.eq.s32.totalorder %s10, 1
    %p39 = por %p37, %p38
    %p40 = scmp.ne.s32.totalorder %s32, %s35
    %p41 = scmp.eq.s32.totalorder %s10, 0
    %p42 = por %p40, %p41
    %p43 = scmp.ne.s32.totalorder %s32, %s35
    %p44 = scmp.eq.s32.totalorder %s15, 1
    %p45 = por %p43, %p44
    %p46 = scmp.ne.s32.totalorder %s35, %s36
    %p47 = scmp.eq.s32.totalorder %s15, 0
    %p48 = por %p46, %p47
    %p49 = scmp.ne.s32.totalorder %s35, %s36
    %p50 = scmp.eq.s32.totalorder %s16, 1
    %p51 = por %p49, %p50
    %p53 = scmp.ne.s32.totalorder %s36, %s52
    %p54 = scmp.eq.s32.totalorder %s16, 0
    %p55 = por %p53, %p54
    %s56 = ssub.s32 %s17, %s29
    %s57 = ssub.s32 %s18, %s25
    %s58 = sor.u32 %s56, %s57
    %p59 = scmp.eq.s32.totalorder %s58, 0
    %s61 = sadd.s32 %s60, 1
    %s62 = scalar_select %p59, %s60, %s61
    %p65 = pneg %p59
    %p66 = scmp.eq.s32.totalorder %s10, 1
    %p67 = por %p65, %p66
    %p68 = scmp.ne.s32.totalorder %s60, %s63
    %p69 = scmp.eq.s32.totalorder %s10, 0
    %p70 = por %p68, %p69
    %p71 = scmp.ne.s32.totalorder %s60, %s63
    %p72 = scmp.eq.s32.totalorder %s15, 1
    %p73 = por %p71, %p72
    %p74 = scmp.ne.s32.totalorder %s63, %s64
    %p75 = scmp.eq.s32.totalorder %s15, 0
    %p76 = por %p74, %p75
    %p77 = scmp.ne.s32.totalorder %s63, %s64
    %p78 = scmp.eq.s32.totalorder %s16, 1
    %p79 = por %p77, %p78
    %p81 = scmp.ne.s32.totalorder %s64, %s80
    %p82 = scmp.eq.s32.totalorder %s16, 0
    %p83 = por %p81, %p82
    %s84 = ssub.s32 %s17, %s29
    %p85 = scmp.eq.s32.totalorder %s84, 0
    %s87 = sadd.s32 %s86, 1
    %s88 = scalar_select %p85, %s86, %s87
    %p91 = pneg %p85
    %p92 = scmp.eq.s32.totalorder %s10, 1
    %p93 = por %p91, %p92
    %p94 = scmp.ne.s32.totalorder %s86, %s89
    %p95 = scmp.eq.s32.totalorder %s10, 0
    %p96 = por %p94, %p95
    %p97 = scmp.ne.s32.totalorder %s86, %s89
    %p98 = scmp.eq.s32.totalorder %s15, 1
    %p99 = por %p97, %p98
    %p100 = scmp.ne.s32.totalorder %s89, %s90
    %p101 = scmp.eq.s32.totalorder %s15, 0
    %p102 = por %p100, %p101
    %p103 = scmp.ne.s32.totalorder %s89, %s90
    %p104 = scmp.eq.s32.totalorder %s16, 1
    %p105 = por %p103, %p104
    %p107 = scmp.ne.s32.totalorder %s90, %s106
    %p108 = scmp.eq.s32.totalorder %s16, 0
    %p109 = por %p107, %p108
    %s110 = ssub.s32 %s17, %s29
    %s111 = ssub.s32 %s18, %s25
    %s112 = sor.u32 %s110, %s111
    %p113 = scmp.eq.s32.totalorder %s112, 0
    %s115 = sadd.s32 %s114, 1
    %s116 = scalar_select %p113, %s114, %s115
    %p119 = pneg %p113
    %p120 = scmp.eq.s32.totalorder %s10, 1
    %p121 = por %p119, %p120
    %p122 = scmp.ne.s32.totalorder %s114, %s117
    %p123 = scmp.eq.s32.totalorder %s10, 0
    %p124 = por %p122, %p123
    %p125 = scmp.ne.s32.totalorder %s114, %s117
    %p126 = scmp.eq.s32.totalorder %s15, 1
    %p127 = por %p125, %p126
    %p128 = scmp.ne.s32.totalorder %s117, %s118
    %p129 = scmp.eq.s32.totalorder %s15, 0
    %p130 = por %p128, %p129
    %p131 = scmp.ne.s32.totalorder %s117, %s118
    %p132 = scmp.eq.s32.totalorder %s16, 1
    %p133 = por %p131, %p132
    %p135 = scmp.ne.s32.totalorder %s118, %s134
    %p136 = scmp.eq.s32.totalorder %s16, 0
    %p137 = por %p135, %p136
    %s138 = ssub.s32 %s17, %s29
    %p139 = scmp.eq.s32.totalorder %s138, 0
    %s141 = sadd.s32 %s140, 1
    %s142 = scalar_select %p139, %s140, %s141
    %p145 = pneg %p139
    %p146 = scmp.eq.s32.totalorder %s10, 1
    %p147 = por %p145, %p146
    %p148 = scmp.ne.s32.totalorder %s140, %s143
    %p149 = scmp.eq.s32.totalorder %s10, 0
    %p150 = por %p148, %p149
    %p151 = scmp.ne.s32.totalorder %s140, %s143
    %p152 = scmp.eq.s32.totalorder %s15, 1
    %p153 = por %p151, %p152
    %p154 = scmp.ne.s32.totalorder %s143, %s144
    %p155 = scmp.eq.s32.totalorder %s15, 0
    %p156 = por %p154, %p155
    %p157 = scmp.ne.s32.totalorder %s143, %s144
    %p158 = scmp.eq.s32.totalorder %s16, 1
    %p159 = por %p157, %p158
    %p161 = scmp.ne.s32.totalorder %s144, %s160
    %p162 = scmp.eq.s32.totalorder %s16, 0
    %p163 = por %p161, %p162
    %p164 = scmp.le.s32.totalorder 1, %s10
    %p165 = scmp.lt.s32.totalorder %s10, 3
    %p166 = pnand %p164, %p165
    %p167 = pneg %p166
    // Predicated region
    $region9: #{tpu_custom_call.1} parent=5 // pred_check
      _
    $region10: #{tpu_custom_call.1} parent=5 // pred_check_branch
      %169 = sbr.rel (%p166) target = $region12
    $region11: #{tpu_custom_call.1} parent=5 // pred_region
      %s170 = ssub.s32 %s10, 1
    $region12: #{tpu_custom_call.1} parent=5 // pred_fallthru
      _
    %p171 = scmp.lt.s32.totalorder %s10, 2
    // Predicated region
    $region13: #{tpu_custom_call.1} parent=5 // pred_check
      %p172 = pneg %p171
    $region14: #{tpu_custom_call.1} parent=5 // pred_check_branch
      %174 = sbr.rel (%p172) target = $region16
    $region15: #{tpu_custom_call.1} parent=5 // pred_region
      // Predicated region
      $region17: #{tpu_custom_call.1} parent=15 // pred_check
        %p175 = pneg %p42
      $region18: #{tpu_custom_call.1} parent=15 // pred_check_branch
        %177 = sbr.rel (%p175) target = $region20
      $region19: #{tpu_custom_call.1} parent=15 // pred_region
        %p178 = scmp.lt.s32.totalorder %s17, 1
        %s179 = scalar_select %p178, %s17, 1
        %s180 = smul.addr %s179, 2
        %s181 = smul.addr %s180, 8
        %s182 = scalar_lea.vmem %s0, %s181
      $region20: #{tpu_custom_call.1} parent=15 // pred_fallthru
        _
      // Predicated region
      $region21: #{tpu_custom_call.1} parent=15 // pred_check
        %p183 = pneg %p70
      $region22: #{tpu_custom_call.1} parent=15 // pred_check_branch
        %185 = sbr.rel (%p183) target = $region24
      $region23: #{tpu_custom_call.1} parent=15 // pred_region
        %p186 = scmp.lt.s32.totalorder %s17, 1
        %s187 = scalar_select %p186, %s17, 1
        %p188 = scmp.lt.s32.totalorder %s18, 0
        %s189 = scalar_select %p188, %s18, 0
        %s190 = sadd.s32 %s189, %s187
        %s191 = smul.addr %s190, 4
        %s192 = scalar_lea.vmem %s1, %s191
      $region24: #{tpu_custom_call.1} parent=15 // pred_fallthru
        _
      // Predicated region
      $region25: #{tpu_custom_call.1} parent=15 // pred_check
        %p193 = pneg %p96
      $region26: #{tpu_custom_call.1} parent=15 // pred_check_branch
        %195 = sbr.rel (%p193) target = $region28
      $region27: #{tpu_custom_call.1} parent=15 // pred_region
        %p196 = scmp.lt.s32.totalorder %s17, 1
        %s197 = scalar_select %p196, %s17, 1
        %s198 = scalar_lea.vmem %s2, %s197
      $region28: #{tpu_custom_call.1} parent=15 // pred_fallthru
        _
      // Predicated region
      $region29: #{tpu_custom_call.1} parent=15 // pred_check
        %p199 = pneg %p124
      $region30: #{tpu_custom_call.1} parent=15 // pred_check_branch
        %201 = sbr.rel (%p199) target = $region32
      $region31: #{tpu_custom_call.1} parent=15 // pred_region
        %p202 = scmp.lt.s32.totalorder %s17, 1
        %s203 = scalar_select %p202, %s17, 1
        %p204 = scmp.lt.s32.totalorder %s18, 0
        %s205 = scalar_select %p204, %s18, 0
        %s206 = sadd.s32 %s205, %s203
        %s207 = scalar_lea.vmem %s3, %s206
      $region32: #{tpu_custom_call.1} parent=15 // pred_fallthru
        _
    $region16: #{tpu_custom_call.1} parent=5 // pred_fallthru
      _
    %p208 = scmp.le.s32.totalorder 1, %s10
    %p209 = scmp.lt.s32.totalorder %s10, 3
    %p210 = pnand %p208, %p209
    %p211 = pneg %p210
    // Predicated region
    $region33: #{tpu_custom_call.1} parent=5 // pred_check
      _
    $region34: #{tpu_custom_call.1} parent=5 // pred_check_branch
      %213 = sbr.rel (%p210) target = $region36
    $region35: #{tpu_custom_call.1} parent=5 // pred_region
      %s214 = ssub.s32 %s10, 1
      %p215 = scmp.lt.s32.totalorder %s19, 1
      %s216 = scalar_select %p215, %s19, 1
      %s217 = smul.addr %s216, 2
      %s218 = smul.addr %s217, 8
      %s219 = scalar_lea.vmem %s0, %s218
      %p220 = pneg %p48
      %p221 = pneg %p45
      %p222 = scmp.lt.s32.totalorder %s19, 1
      %s223 = scalar_select %p222, %s19, 1
      %p224 = scmp.lt.s32.totalorder %s20, 0
      %s225 = scalar_select %p224, %s20, 0
      %s226 = sadd.s32 %s225, %s223
      %s227 = smul.addr %s226, 4
      %s228 = scalar_lea.vmem %s1, %s227
      %p229 = pneg %p76
      %p230 = pneg %p73
      %p231 = scmp.lt.s32.totalorder %s19, 1
      %s232 = scalar_select %p231, %s19, 1
      %s233 = scalar_lea.vmem %s2, %s232
      %p234 = pneg %p102
      %p235 = pneg %p99
      %p236 = scmp.lt.s32.totalorder %s19, 1
      %s237 = scalar_select %p236, %s19, 1
      %p238 = scmp.lt.s32.totalorder %s20, 0
      %s239 = scalar_select %p238, %s20, 0
      %s240 = sadd.s32 %s239, %s237
      %s241 = scalar_lea.vmem %s3, %s240
      %p242 = pneg %p130
      %p243 = pneg %p127
      %p244 = pneg %p156
      %p245 = pneg %p153
      %p246 = scmp.lt.s32.totalorder %s19, 1
      %s247 = scalar_select %p246, %s19, 1
      %s248 = scalar_lea.vmem %s4, %s247
      %p249 = scmp.lt.s32.totalorder %s19, 1
      %s250 = scalar_select %p249, %s19, 1
      %s251 = smul.addr %s250, 2
      %s252 = smul.addr %s251, 8
      %s253 = scalar_lea.vmem %s0, %s252
      %p254 = scmp.lt.s32.totalorder %s19, 1
      %s255 = scalar_select %p254, %s19, 1
      %p256 = scmp.lt.s32.totalorder %s20, 0
      %s257 = scalar_select %p256, %s20, 0
      %s258 = sadd.s32 %s257, %s255
      %s259 = smul.addr %s258, 4
      %s260 = scalar_lea.vmem %s1, %s259
      %p261 = scmp.lt.s32.totalorder %s19, 1
      %s262 = scalar_select %p261, %s19, 1
      %s263 = scalar_lea.vmem %s2, %s262
      %p264 = scmp.lt.s32.totalorder %s19, 1
      %s265 = scalar_select %p264, %s19, 1
      %p266 = scmp.lt.s32.totalorder %s20, 0
      %s267 = scalar_select %p266, %s20, 0
      %s268 = sadd.s32 %s267, %s265
      %s269 = scalar_lea.vmem %s3, %s268
      %p270 = scmp.lt.s32.totalorder %s19, 1
      %s271 = scalar_select %p270, %s19, 1
      %s272 = scalar_lea.vmem %s4, %s271
      %p273 = scmp.eq.s32.totalorder %s20, 0
      // Predicated region
      $region37: #{tpu_custom_call.1} parent=35 // pred_check
        %p274 = pneg %p273
      $region38: #{tpu_custom_call.1} parent=35 // pred_check_branch
        %276 = sbr.rel (%p274) target = $region40
      $region39: #{tpu_custom_call.1} parent=35 // pred_region
        %277 = vst [vmem:[#allocation2] sm:$0xff] inf
        %278 = vst [vmem:[#allocation2 + $0x8] sm:$0xff] inf
        %vm279 = vcmask 0
        %280 = vst.msk [vmem:[#allocation3] sm:$0x1] %vm279, 0.0
        %281 = vst.msk [vmem:[#allocation4] sm:$0x1] %vm279, 0.0
      $region40: #{tpu_custom_call.1} parent=35 // pred_fallthru
        _
      %v282 = vld [vmem:[%s253] sm:$0xff]
      %v283 = vld [vmem:[%s253 + $0x8] sm:$0xff]
      %v284 = vld [vmem:[%s260] sm:$0xf]
      %v285 = vld [vmem:[%s269] sm:$0x1]
      %vm286 = vcmask 31744
      %v288 = vsel %vm286, %v282, 0
      %v291 = vsel %vm286, %v283, 0
      %vm293 = vcmask 1043456
      %v295 = vsel %vm293, %v284, 0
      %297 = vmatpush.msra.mxu0 0.0
      %298 = vmatpush.msra.mxu0 0.0
      %299 = vmatpush.msra.mxu0 0.0
      %300 = vmatpush.msra.mxu0 0.0
      %301 = vmatpush.msra.mxu0 0.0
      %302 = vmatpush.msra.mxu0 0.0
      %303 = vmatpush.msra.mxu0 0.0
      %304 = vmatpush.msra.mxu0 0.0
      %305 = vmatpush.msra.mxu0 0.0
      %306 = vmatpush.msra.mxu0 0.0
      %307 = vmatpush.msra.mxu0 0.0
      %308 = vmatpush.msra.mxu0 0.0
      %309 = vmatpush.msra.mxu0 0.0
      %310 = vmatpush.msra.mxu0 0.0
      %311 = vmatpush.msra.mxu0 0.0
      %312 = vmatpush.msra.mxu0 %v295
      %313 = vmatmul.f32.gmra.mxu0 %v288
      %v314 = vpop.f32.mrf.mxu0
      %v315 = vadd.f32 0.0, %v314
      %316 = vmatmul.f32.gmra.mxu0 %v291
      %v317 = vpop.f32.mrf.mxu0
      %v318 = vadd.f32 0.0, %v317
      %319 = vdwg.mxu0
      %v320 = vld [vmem:[#allocation2] sm:$0xff]
      %v321 = vld [vmem:[#allocation2 + $0x8] sm:$0xff]
      %v322 = vmin.f32 %v320, %v315
      %v323 = vmin.f32 %v321, %v318
      %324 = vst [vmem:[#allocation2] sm:$0xff] %v322
      %325 = vst [vmem:[#allocation2 + $0x8] sm:$0xff] %v323
      %v326 = vmin.f32 %v315, %v318
      %v327 = vrot.slane %v326, 4
      %v328 = vmin.f32 %v326, %v327
      %v329 = vrot.slane %v328, 2
      %v330 = vmin.f32 %v328, %v329
      %v331 = vrot.slane %v330, 1
      %v332 = vmin.f32 %v330, %v331
      %v333 = vld [vmem:[#allocation3] sm:$0x1]
      %v334 = vmul.f32 %v332, %v285
      %vm335 = vcmask 1040384
      %v336 = vsel %vm335, %v334, 0.0
      %337 = vadd.xlane.f32.xlu0 %v336
      %v338 = vpop.xlane.xlu0 %337
      %v339 = vadd.f32 %v333, %v338
      %vm340 = vcmask 0
      %341 = vst.msk [vmem:[#allocation3] sm:$0x1] %vm340, %v339
      %v342 = vld [vmem:[#allocation4] sm:$0x1]
      %v343 = vsel %vm335, %v285, 0.0
      %344 = vadd.xlane.f32.xlu0 %v343
      %v345 = vpop.xlane.xlu0 %344
      %v346 = vadd.f32 %v342, %v345
      %347 = vst.msk [vmem:[#allocation4] sm:$0x1] %vm340, %v346
      // Predicated region
      $region41: #{tpu_custom_call.1} parent=35 // pred_check
        %p348 = pneg %p273
      $region42: #{tpu_custom_call.1} parent=35 // pred_check_branch
        %350 = sbr.rel (%p348) target = $region44
      $region43: #{tpu_custom_call.1} parent=35 // pred_region
        %v351 = vld [vmem:[%s263] sm:$0x1]
        %v352 = vld [vmem:[#allocation2] sm:$0xff]
        %v353 = vld [vmem:[#allocation2 + $0x8] sm:$0xff]
        %354 = vmin.xlane.f32.xlu0 %v352
        %v355 = vpop.xlane.xlu0 %354
        %356 = vmin.xlane.f32.xlu0 %v353
        %v357 = vpop.xlane.xlu0 %356
        %vm358 = vcmask 130048
        %v360 = vsel %vm358, %v351, 0
        %362 = vmatpush.msra.mxu0 0.0
        %363 = vmatpush.msra.mxu0 0.0
        %364 = vmatpush.msra.mxu0 0.0
        %365 = vmatpush.msra.mxu0 0.0
        %366 = vmatpush.msra.mxu0 0.0
        %367 = vmatpush.msra.mxu0 0.0
        %368 = vmatpush.msra.mxu0 0.0
        %369 = vmatpush.msra.mxu0 0.0
        %370 = vmatpush.msra.mxu0 0.0
        %371 = vmatpush.msra.mxu0 0.0
        %372 = vmatpush.msra.mxu0 0.0
        %373 = vmatpush.msra.mxu0 0.0
        %374 = vmatpush.msra.mxu0 0.0
        %375 = vmatpush.msra.mxu0 0.0
        %376 = vmatpush.msra.mxu0 %v357
        %377 = vmatpush.msra.mxu0 %v355
        %378 = vmatmul.f32.gmra.mxu0 %v360
        %v379 = vpop.f32.mrf.mxu0
        %v380 = vadd.f32 0.0, %v379
        %381 = vdwg.mxu0
        %vm382 = vcmask 122880
        %v383 = vsel %vm382, %v351, 0.0
        %384 = vadd.xlane.f32.xlu0 %v383
        %v385 = vpop.xlane.xlu0 %384
        %v386 = vrcp.pop %v385
        %v387 = vmul.f32 %v385, %v386
        %v388 = vsub.f32 1.0, %v387
        %v389 = vmul.f32 %v386, %v388
        %v390 = vadd.f32 %v386, %v389
        %vm391 = vweird.f32 %v385
        %vm392 = vweird.f32 %v386
        %vm393 = vmor %vm391, %vm392
        %v394 = vsel %vm393, %v386, %v390
        %v395 = vand.u32 2147483647, %v385
        %vm396 = vcmp.eq.f32.partialorder %v395, 8.507059e+37
        %v397 = vand.u32 %v385, 2147483648
        %v398 = vor.u32 1.1754944e-38, %v397
        %v399 = vsel %vm396, %v398, %v394
        %v400 = vmul.f32 %v380, %v399
        %v401 = vld [vmem:[#allocation3] sm:$0x1]
        %v402 = vld [vmem:[#allocation4] sm:$0x1]
        %v403 = vrcp.pop %v402
        %v404 = vmul.f32 %v402, %v403
        %v405 = vsub.f32 1.0, %v404
        %v406 = vmul.f32 %v403, %v405
        %v407 = vadd.f32 %v403, %v406
        %vm408 = vweird.f32 %v402
        %vm409 = vweird.f32 %v403
        %vm410 = vmor %vm408, %vm409
        %v411 = vsel %vm410, %v403, %v407
        %v412 = vand.u32 2147483647, %v402
        %vm413 = vcmp.eq.f32.partialorder %v412, 8.507059e+37
        %v414 = vand.u32 %v402, 2147483648
        %v415 = vor.u32 1.1754944e-38, %v414
        %v416 = vsel %vm413, %v415, %v411
        %v417 = vmul.f32 %v401, %v416
        %v418 = vadd.f32 %v400, %v417
        %419 = vst.msk [vmem:[%s272] sm:$0x1] %vm340, %v418
      $region44: #{tpu_custom_call.1} parent=35 // pred_fallthru
        _
      %p420 = scmp.lt.s32.totalorder %s19, 1
      %s421 = scalar_select %p420, %s19, 1
      %s422 = scalar_lea.vmem %s4, %s421
      // Predicated region
      $region45: #{tpu_custom_call.1} parent=35 // pred_check
        %p423 = pneg %p153
      $region46: #{tpu_custom_call.1} parent=35 // pred_check_branch
        %425 = sbr.rel (%p423) target = $region48
      $region47: #{tpu_custom_call.1} parent=35 // pred_region
        _
      $region48: #{tpu_custom_call.1} parent=35 // pred_fallthru
        _
    $region36: #{tpu_custom_call.1} parent=5 // pred_fallthru
      _
    %p426 = scmp.le.s32.totalorder 2, %s10
    // Predicated region
    $region49: #{tpu_custom_call.1} parent=5 // pred_check
      %p427 = pneg %p426
    $region50: #{tpu_custom_call.1} parent=5 // pred_check_branch
      %429 = sbr.rel (%p427) target = $region52
    $region51: #{tpu_custom_call.1} parent=5 // pred_region
      %s430 = ssub.s32 %s10, 2
      // Predicated region
      $region53: #{tpu_custom_call.1} parent=51 // pred_check
        %p431 = pneg %p159
      $region54: #{tpu_custom_call.1} parent=51 // pred_check_branch
        %433 = sbr.rel (%p431) target = $region56
      $region55: #{tpu_custom_call.1} parent=51 // pred_region
        %p434 = scmp.lt.s32.totalorder %s21, 1
        %s435 = scalar_select %p434, %s21, 1
        %s436 = scalar_lea.vmem %s4, %s435
      $region56: #{tpu_custom_call.1} parent=51 // pred_fallthru
        _
    $region52: #{tpu_custom_call.1} parent=5 // pred_fallthru
      _
  $region6: #{tpu_custom_call.1} parent=0 // loop_footer
    %s14 = sadd.s32 1, %s10
  $region7: #{tpu_custom_call.1} parent=0 // loop_footer_branch
    %9 = sbr.rel target = $region3
  $region8: #{tpu_custom_call.1} parent=0 // loop_exit
    _

</llo_original>
